<compile_context>
chip_gen: v5e
topology: v5e:2x2
jax: 0.10.0
libtpu: 0.0.40
codegen_flags: <defaults>
</compile_context>

<pallas_src>
import jax
import jax.numpy as jnp
from jax.experimental import pallas as pl
from jax.experimental.pallas import tpu as pltpu

LANES = 128
SUBLANES = 8
CHUNK_ROWS = 512          # rows per in-kernel reduction chunk (bounds f32 temporaries)
_MIN_SPLIT_ROWS = 4096    # don't split across cores below this many rows per core


def _device_kind():
    try:
        return jax.devices()[0].device_kind.lower()
    except Exception:
        return ""


def _pick_config(rows_valid, itemsize, pack):
    kind = _device_kind()
    # ~16 MiB of double-buffered inputs on v6e/v7x, ~8 MiB on the smaller v5e.
    is_v5e = ("v5 lite" in kind) or ("v5e" in kind) or ("v5lite" in kind)
    input_budget = (8 << 20) if is_v5e else (16 << 20)
    # Only chips with >1 TensorCore per device benefit from the leading
    # "parallel" split axis (v4/v5p megacore, v7x).  On 1-TC chips it would
    # just shrink tiles and add per-grid-step overhead.
    multi_tc = any(tag in kind for tag in ("v7", "tpu7", "v4", "v5p"))
    split = 2 if (multi_tc and rows_valid >= 2 * _MIN_SPLIT_ROWS) else 1

    rows_per_split = -(-rows_valid // split)
    # 2 inputs x 2 pipeline buffers per tile, dtype-aware.
    tm_cap = max(pack, input_budget // (4 * LANES * itemsize))
    tm = min(tm_cap, rows_per_split)
    tm = (tm // pack) * pack                    # safe sublane packing, never > rows
    if tm > CHUNK_ROWS:
        tm = (tm // CHUNK_ROWS) * CHUNK_ROWS    # whole number of reduction chunks
    chunk = min(CHUNK_ROWS, tm)
    inner = -(-rows_per_split // tm)
    total_blocks = -(-rows_valid // tm)         # number of blocks holding any valid row
    return split, tm, chunk, inner, total_blocks


def _make_masked_mse_kernel(margin, tm, chunk, inner, rows_valid, covered_rows):
    nchunks = tm // chunk
    needs_row_mask = covered_rows > rows_valid
    margin = float(margin)

    def kernel(x_ref, t_ref, out_ref):
        # (1, 8, 128) f32 partial-sum block, resident across the inner
        # ("arbitrary") grid axis; zeroed on the first inner step of each split.
        @pl.when(pl.program_id(1) == 0)
        def _():
            out_ref[...] = jnp.zeros_like(out_ref)

        m = jnp.float32(margin)
        block_row0 = (pl.program_id(0) * inner + pl.program_id(1)) * tm

        if needs_row_mask:
            row_iota = jax.lax.broadcasted_iota(jnp.int32, (chunk, LANES), 0)

        def chunk_sum(row0, masked):
            x = x_ref[pl.ds(row0, chunk), :].astype(jnp.float32)
            t = t_ref[pl.ds(row0, chunk), :].astype(jnp.float32)
            diff = x - t
            # Exact PyTorch form (keeps boundary behaviour bit-identical to the
            # reference; the cheaper |x-t|>m form can flip elements at |x-t|~m).
            cond = (x < t - m) | (x > t + m)
            if masked:
                valid = (row_iota + (block_row0 + row0)) < rows_valid
                cond = jnp.logical_and(cond, valid)
            sq = jnp.where(cond, diff * diff, jnp.float32(0.0))
            # Fold (chunk, 128) onto an (8, 128) vreg-shaped partial: pure VPU adds.
            return sq.reshape(chunk // SUBLANES, SUBLANES, LANES).sum(axis=0)

        def accumulate(masked):
            if nchunks == 1:
                partial = chunk_sum(0, masked)
            else:
                def body(c, acc):
                    row0 = pl.multiple_of(c * chunk, chunk)
                    return acc + chunk_sum(row0, masked)
                partial = jax.lax.fori_loop(
                    0, nchunks, body,
                    jnp.zeros((SUBLANES, LANES), jnp.float32),
                    unroll=nchunks <= 8)
            out_ref[...] += partial.reshape(1, SUBLANES, LANES)

        if not needs_row_mask:
            accumulate(False)
        else:
            # Only the (at most one) partial block per split pays for the row
            # mask; full blocks take the unmasked path.
            block_is_full = (block_row0 + tm) <= rows_valid

            @pl.when(block_is_full)
            def _():
                accumulate(False)

            @pl.when(jnp.logical_not(block_is_full))
            def _():
                accumulate(True)

    return kernel


def _masked_sq_sum_jnp(x, t, margin):
    x = x.astype(jnp.float32)
    t = t.astype(jnp.float32)
    d = x - t
    cond = (x < t - margin) | (x > t + margin)
    return jnp.sum(jnp.where(cond, d * d, jnp.float32(0.0)))


def custom_mse_loss(inp, target, margin=0.025):
    assert inp.shape == target.shape
    total = int(inp.size)
    if total == 0:
        return jnp.float32(0.0)

    x_flat = inp.reshape(-1)       # free reshape (contiguous)
    t_flat = target.reshape(-1)
    m32 = jnp.float32(margin)

    itemsize = int(jnp.dtype(x_flat.dtype).itemsize)
    pack = max(SUBLANES, 32 // max(itemsize, 1))   # f32:8, bf16:16, int8/fp8:32

    rows_valid = total // LANES
    prefix = rows_valid * LANES
    rem = total - prefix

    # Tiny inputs: not worth a kernel launch; pure jnp keeps tiling assumptions simple.
    if rows_valid < pack:
        return _masked_sq_sum_jnp(x_flat, t_flat, m32) / jnp.float32(total)

    # Ragged <128-element tail (only for non-128-aligned totals): reduce with
    # plain jnp in the wrapper instead of padding/rewriting both tensors in HBM.
    tail_sum = jnp.float32(0.0)
    if rem:
        xt = jax.lax.slice(x_flat, (prefix,), (total,))
        tt = jax.lax.slice(t_flat, (prefix,), (total,))
        tail_sum = _masked_sq_sum_jnp(xt, tt, m32)
        # NOTE: prefix slice may materialise a copy only in this rare non-aligned
        # case; for 128-aligned totals (common case) no copy is ever made.
        x_flat = jax.lax.slice(x_flat, (0,), (prefix,))
        t_flat = jax.lax.slice(t_flat, (0,), (prefix,))

    x2d = x_flat.reshape(rows_valid, LANES)
    t2d = t_flat.reshape(rows_valid, LANES)

    split, tm, chunk, inner, total_blocks = _pick_config(rows_valid, itemsize, pack)
    covered_rows = split * inner * tm
    last_block = total_blocks - 1

    kernel = _make_masked_mse_kernel(margin, tm, chunk, inner, rows_valid, covered_rows)

    # Clamp the block index so no DMA starts past the last row-holding block;
    # any grid step beyond it re-reads that block and is zeroed by the row mask.
    def in_index(p, i):
        return (jnp.minimum(p * inner + i, last_block), 0)

    in_buffer_bytes = 4 * tm * LANES * itemsize   # 2 inputs x 2 pipeline buffers
    cost = pl.CostEstimate(
        flops=8 * prefix,
        transcendentals=0,
        bytes_accessed=2 * prefix * itemsize + split * SUBLANES * LANES * 4,
    )

    partials = pl.pallas_call(
        kernel,
        out_shape=jax.ShapeDtypeStruct((split, SUBLANES, LANES), jnp.float32),
        grid_spec=pltpu.PrefetchScalarGridSpec(
            num_scalar_prefetch=0,
            grid=(split, inner),
            in_specs=[
                pl.BlockSpec((tm, LANES), in_index),
                pl.BlockSpec((tm, LANES), in_index),
            ],
            out_specs=pl.BlockSpec((1, SUBLANES, LANES), lambda p, i: (p, 0, 0)),
        ),
        compiler_params=pltpu.CompilerParams(
            # "parallel" shards the split axis across TensorCores on multi-TC
            # chips (split is 1 on v5e/v6e so this is a no-op there).
            # TODO(synk): evaluate pltpu.CORE_PARALLEL for this axis once
            # verified on the v7x toolchain.
            dimension_semantics=("parallel", "arbitrary"),
            vmem_limit_bytes=int(in_buffer_bytes + (8 << 20)),
        ),
        cost_estimate=cost,
    )(x2d, t2d)

    # Single cross-lane reduce + divide by the TRUE element count.
    return (jnp.sum(partials) + tail_sum) / jnp.float32(total)


def _reference(inp, target, margin=0.025):
    lower = target - margin
    upper = target + margin
    loss = jnp.where((inp < lower) | (inp > upper), (inp - target) ** 2, 0.0)
    return loss.mean()


if __name__ == "__main__":
    key = jax.random.PRNGKey(0)
    k1, k2 = jax.random.split(key)
    # small shape consistent with an arbitrary-tensor loss: (2, 4, 16, 16)
    x = jax.random.normal(k1, (2, 4, 16, 16), dtype=jnp.float32) * 0.1
    t = x + jax.random.normal(k2, (2, 4, 16, 16), dtype=jnp.float32) * 0.05

    loss = custom_mse_loss(x, t)
    jax.block_until_ready(loss)

    ref = _reference(x, t)
    assert jnp.allclose(loss, ref, rtol=1e-5, atol=1e-6), (loss, ref)
    print("KERNEL_OK")
</pallas_src>

<mosaic_0001>
module attributes {stable_mosaic.version = 11 : i64} {
  func.func @kernel(%arg0: i32, %arg1: i32, %arg2: memref<16x128xf32, #tpu.memory_space<vmem>>, %arg3: memref<16x128xf32, #tpu.memory_space<vmem>>, %arg4: memref<1x8x128xf32, #tpu.memory_space<vmem>>) attributes {dimension_semantics = [#tpu.dimension_semantics<parallel>, #tpu.dimension_semantics<arbitrary>], iteration_bounds = array<i64: 1, 1>, scalar_prefetch = 0 : i64, scratch_operands = 0 : i64, tpu.core_type = #tpu.core_type<tc>, window_params = [{transform_indices = @transform_0, window_bounds = array<i64: 16, 128>}, {transform_indices = @transform_1, window_bounds = array<i64: 16, 128>}, {transform_indices = @transform_2, window_bounds = array<i64: 1, 8, 128>}]} {
    %c0_i32 = arith.constant 0 : i32
    %0 = arith.cmpi eq, %arg1, %c0_i32 : i32
    %1 = arith.extui %0 : i1 to i32
    %c0_i32_0 = arith.constant 0 : i32
    %2 = arith.cmpi ne, %1, %c0_i32_0 : i32
    scf.if %2 {
      %cst_13 = arith.constant 0.000000e+00 : f32
      %22 = vector.broadcast %cst_13 : f32 to vector<1x8x128xf32>
      %c0_14 = arith.constant 0 : index
      %c0_15 = arith.constant 0 : index
      %c0_16 = arith.constant 0 : index
      %23 = vector.load %arg4[%c0_14, %c0_15, %c0_16] : memref<1x8x128xf32, #tpu.memory_space<vmem>>, vector<1x8x128xf32>
      tpu.vector_store %arg4[%c0_14, %c0_15, %c0_16], %22 {strides = array<i32>} : memref<1x8x128xf32, #tpu.memory_space<vmem>>, vector<1x8x128xf32>,
    } else {
    }
    %c0 = arith.constant 0 : index
    %c0_1 = arith.constant 0 : index
    %3 = vector.load %arg2[%c0, %c0_1] : memref<16x128xf32, #tpu.memory_space<vmem>>, vector<16x128xf32>
    %c0_2 = arith.constant 0 : index
    %c0_3 = arith.constant 0 : index
    %4 = vector.load %arg3[%c0_2, %c0_3] : memref<16x128xf32, #tpu.memory_space<vmem>>, vector<16x128xf32>
    %5 = arith.subf %3, %4 : vector<16x128xf32>
    %cst = arith.constant 2.500000e-02 : f32
    %6 = vector.broadcast %cst : f32 to vector<16x128xf32>
    %7 = arith.subf %4, %6 : vector<16x128xf32>
    %8 = arith.cmpf olt, %3, %7 : vector<16x128xf32>
    %cst_4 = arith.constant 2.500000e-02 : f32
    %9 = vector.broadcast %cst_4 : f32 to vector<16x128xf32>
    %10 = arith.addf %4, %9 : vector<16x128xf32>
    %11 = arith.cmpf ogt, %3, %10 : vector<16x128xf32>
    %12 = arith.ori %8, %11 : vector<16x128xi1>
    %13 = arith.mulf %5, %5 : vector<16x128xf32>
    %cst_5 = arith.constant 0.000000e+00 : f32
    %14 = vector.broadcast %cst_5 : f32 to vector<16x128xf32>
    %15 = arith.select %12, %13, %14 : vector<16x128xi1>, vector<16x128xf32>
    %16 = vector.shape_cast %15 : vector<16x128xf32> to vector<2x8x128xf32>
    %cst_6 = arith.constant dense<0.000000e+00> : vector<8x128xf32>
    %17 = vector.multi_reduction <add>, %16, %cst_6 [0] : vector<2x8x128xf32> to vector<8x128xf32>
    %c0_7 = arith.constant 0 : index
    %c0_8 = arith.constant 0 : index
    %c0_9 = arith.constant 0 : index
    %18 = vector.load %arg4[%c0_7, %c0_8, %c0_9] : memref<1x8x128xf32, #tpu.memory_space<vmem>>, vector<1x8x128xf32>
    %19 = vector.shape_cast %17 : vector<8x128xf32> to vector<1x8x128xf32>
    %20 = arith.addf %18, %19 : vector<1x8x128xf32>
    %c0_10 = arith.constant 0 : index
    %c0_11 = arith.constant 0 : index
    %c0_12 = arith.constant 0 : index
    %21 = vector.load %arg4[%c0_10, %c0_11, %c0_12] : memref<1x8x128xf32, #tpu.memory_space<vmem>>, vector<1x8x128xf32>
    tpu.vector_store %arg4[%c0_10, %c0_11, %c0_12], %20 {strides = array<i32>} : memref<1x8x128xf32, #tpu.memory_space<vmem>>, vector<1x8x128xf32>,
    return
  }
  func.func @transform_0(%arg0: i32, %arg1: i32) -> (i32, i32) {
    %c1_i32 = arith.constant 1 : i32
    %0 = arith.muli %arg0, %c1_i32 : i32
    %1 = arith.addi %0, %arg1 : i32
    %c0_i32 = arith.constant 0 : i32
    %2 = arith.minsi %1, %c0_i32 : i32
    %c0_i32_0 = arith.constant 0 : i32
    %c0_i32_1 = arith.constant 0 : i32
    return %2, %c0_i32_0 : i32, i32
  }
  func.func @transform_1(%arg0: i32, %arg1: i32) -> (i32, i32) {
    %c1_i32 = arith.constant 1 : i32
    %0 = arith.muli %arg0, %c1_i32 : i32
    %1 = arith.addi %0, %arg1 : i32
    %c0_i32 = arith.constant 0 : i32
    %2 = arith.minsi %1, %c0_i32 : i32
    %c0_i32_0 = arith.constant 0 : i32
    %c0_i32_1 = arith.constant 0 : i32
    return %2, %c0_i32_0 : i32, i32
  }
  func.func @transform_2(%arg0: i32, %arg1: i32) -> (i32, i32, i32) {
    %c0_i32 = arith.constant 0 : i32
    %c0_i32_0 = arith.constant 0 : i32
    %c0_i32_1 = arith.constant 0 : i32
    return %arg0, %c0_i32, %c0_i32_0 : i32, i32, i32
  }
}

</mosaic_0001>

<llo_original>
// kernel: tpu_custom_call.1
$region0: #{tpu_custom_call.1}
  #allocation0 [shape = 'u32[]', space=smem, size = 0x4, offset = 0x4, fixed_abs, tag = 'smem constant byte address 0x4 - core index']
  #allocation1 [shape = 'u32[72,128]{1,0:T(1,128)}', space=vmem, size = 0x9000, scoped, tag = 'internal scratch']
  %s0 = inlined_call_operand.hbm [shape: f32[16,128], index: 0, kind: input, shape index: {}]
  %s1 = inlined_call_operand.hbm [shape: f32[16,128], index: 1, kind: input, shape index: {}]
  %s2 = inlined_call_operand.hbm [shape: f32[1,8,128], index: 2, kind: output, shape index: {}]
  %s3 = sld [smem:[#allocation0]]
  $region30: #{tpu_custom_call.1} parent=0
    _
  %s5 = ssub.s32 1, %s3
  %s6 = scalar_select 0, %s5, %s3
  $region1: #{tpu_custom_call.1} parent=0
    #allocation2 [shape = 'u8[8192]{0}', space=vmem, size = 0x2000, scoped, tag = 'input window, operand 0, single buffered']
    #allocation3 [shape = 's32[1]{0}', space=sflag, size = 0x4, scoped, tag = 'scoped memory for tpu_custom_call.1']
    #allocation4 [shape = 's32[1]{0}', space=sflag, size = 0x4, scoped, tag = 'scoped memory for tpu_custom_call.1']
    #allocation5 [shape = 'u8[8192]{0}', space=vmem, size = 0x2000, scoped, tag = 'input window, operand 1, single buffered']
    #allocation6 [shape = 's32[1]{0}', space=sflag, size = 0x4, scoped, tag = 'scoped memory for tpu_custom_call.1']
    #allocation7 [shape = 'u8[4096]{0}', space=vmem, size = 0x1000, scoped, tag = 'output window, operand 0, single buffered']
    %7 = vsyncpa [#allocation3], 0
    %8 = vsyncpa [#allocation6], 0
    %9 = vsyncpa [#allocation4], 0
    // Predicated region
    $region2: #{tpu_custom_call.1} parent=1 // pred_check
      _
    $region3: #{tpu_custom_call.1} parent=1 // pred_check_branch
      %11 = sbr.rel (0) target = $region5
    $region4: #{tpu_custom_call.1} parent=1 // pred_region
      %s12 = sadd.s32 0, 0
      %p13 = scmp.lt.s32.totalorder %s12, 0
      %s14 = scalar_select %p13, %s12, 0
      %s15 = smul.u32 2, %s14
      %17 = vsyncadd [#allocation3], 0
      %s18 = smul.addr %s15, 8
      %s19 = scalar_lea.hbm %s0, %s18
      %s20 = sshll.u32 %s19, 4
      %s21 = int_to_ptr.hbm [resolvable:$true] %s20
      %s22 = sshll.u32 [#allocation2], 4
      %s23 = int_to_ptr.vmem [resolvable:$true] %s22
      %28 = dma.hbm_to_vmem [thread:$0]  %s21, 256, %s23, [#allocation3], 128, 128, 8
    $region5: #{tpu_custom_call.1} parent=1 // pred_fallthru
      _
    // Predicated region
    $region6: #{tpu_custom_call.1} parent=1 // pred_check
      _
    $region7: #{tpu_custom_call.1} parent=1 // pred_check_branch
      %30 = sbr.rel (0) target = $region9
    $region8: #{tpu_custom_call.1} parent=1 // pred_region
      %s31 = sadd.s32 0, 0
      %p32 = scmp.lt.s32.totalorder %s31, 0
      %s33 = scalar_select %p32, %s31, 0
      %s34 = smul.u32 2, %s33
      %36 = vsyncadd [#allocation6], 0
      %s37 = smul.addr %s34, 8
      %s38 = scalar_lea.hbm %s1, %s37
      %s39 = sshll.u32 %s38, 4
      %s40 = int_to_ptr.hbm [resolvable:$true] %s39
      %s41 = sshll.u32 [#allocation5], 4
      %s42 = int_to_ptr.vmem [resolvable:$true] %s41
      %47 = dma.hbm_to_vmem [thread:$0]  %s40, 256, %s42, [#allocation6], 128, 128, 8
    $region9: #{tpu_custom_call.1} parent=1 // pred_fallthru
      _
    // Predicated region
    $region10: #{tpu_custom_call.1} parent=1 // pred_check
      _
    $region11: #{tpu_custom_call.1} parent=1 // pred_check_branch
      %49 = sbr.rel (0) target = $region13
    $region12: #{tpu_custom_call.1} parent=1 // pred_region
      %51 = dma.done [#allocation3], 256
    $region13: #{tpu_custom_call.1} parent=1 // pred_fallthru
      _
    // Predicated region
    $region14: #{tpu_custom_call.1} parent=1 // pred_check
      _
    $region15: #{tpu_custom_call.1} parent=1 // pred_check_branch
      %53 = sbr.rel (0) target = $region17
    $region16: #{tpu_custom_call.1} parent=1 // pred_region
      %55 = dma.done [#allocation6], 256
    $region17: #{tpu_custom_call.1} parent=1 // pred_fallthru
      _
    %s56 = sadd.s32 0, 0
    %p57 = scmp.lt.s32.totalorder %s56, 0
    %s58 = scalar_select %p57, %s56, 0
    %s59 = smul.u32 2, %s58
    %s60 = sadd.s32 0, 0
    %p61 = scmp.lt.s32.totalorder %s60, 0
    %s62 = scalar_select %p61, %s60, 0
    %s63 = smul.u32 2, %s62
    %p64 = scmp.eq.s32.totalorder 0, 0
    // Predicated region
    $region18: #{tpu_custom_call.1} parent=1 // pred_check
      %p65 = pneg %p64
    $region19: #{tpu_custom_call.1} parent=1 // pred_check_branch
      %67 = sbr.rel (%p65) target = $region21
    $region20: #{tpu_custom_call.1} parent=1 // pred_region
      %68 = vst [vmem:[#allocation7] sm:$0xff] 0.0
    $region21: #{tpu_custom_call.1} parent=1 // pred_fallthru
      _
    %v69 = vld [vmem:[#allocation2] sm:$0xff]
    %v70 = vld [vmem:[#allocation2 + $0x8] sm:$0xff]
    %v71 = vld [vmem:[#allocation5] sm:$0xff]
    %v72 = vld [vmem:[#allocation5 + $0x8] sm:$0xff]
    %v73 = vsub.f32 %v69, %v71
    %v74 = vsub.f32 %v70, %v72
    %v75 = vsub.f32 %v71, 0.025
    %v76 = vsub.f32 %v72, 0.025
    %vm77 = vcmp.lt.f32.partialorder %v69, %v75
    %vm78 = vcmp.lt.f32.partialorder %v70, %v76
    %v79 = vadd.f32 %v71, 0.025
    %v80 = vadd.f32 %v72, 0.025
    %vm81 = vcmp.gt.f32.partialorder %v69, %v79
    %vm82 = vcmp.gt.f32.partialorder %v70, %v80
    %vm83 = vmor %vm77, %vm81
    %vm84 = vmor %vm78, %vm82
    %v85 = vmul.f32 %v73, %v73
    %v86 = vmul.f32 %v74, %v74
    %v87 = vsel %vm83, %v85, 0.0
    %v88 = vsel %vm84, %v86, 0.0
    %v89 = vadd.f32 %v87, %v88
    %v90 = vld [vmem:[#allocation7] sm:$0xff]
    %v91 = vadd.f32 %v90, %v89
    %92 = vst [vmem:[#allocation7] sm:$0xff] %v91
    // Predicated region
    $region22: #{tpu_custom_call.1} parent=1 // pred_check
      _
    $region23: #{tpu_custom_call.1} parent=1 // pred_check_branch
      %94 = sbr.rel (0) target = $region25
    $region24: #{tpu_custom_call.1} parent=1 // pred_region
      %96 = vsyncadd [#allocation4], 0
      %s98 = sshll.u32 [#allocation7], 4
      %s99 = int_to_ptr.vmem [resolvable:$true] %s98
      %s100 = sshll.u32 %s2, 4
      %s101 = int_to_ptr.hbm [resolvable:$true] %s100
      %103 = dma.vmem_to_hbm [thread:$0]  %s99, 128, %s101, [#allocation4]
    $region25: #{tpu_custom_call.1} parent=1 // pred_fallthru
      _
    // Predicated region
    $region26: #{tpu_custom_call.1} parent=1 // pred_check
      _
    $region27: #{tpu_custom_call.1} parent=1 // pred_check_branch
      %105 = sbr.rel (0) target = $region29
    $region28: #{tpu_custom_call.1} parent=1 // pred_region
      %107 = dma.done [#allocation4], 128
    $region29: #{tpu_custom_call.1} parent=1 // pred_fallthru
      _
    %108 = vsyncpa [#allocation3], 1
    %109 = vsyncpa [#allocation6], 1
    %110 = vsyncpa [#allocation4], 1

</llo_original>
